<compile_context>
chip_gen: v7x
topology: tpu7x:2x2x1
jax: 0.10.0
libtpu: 0.0.40
codegen_flags: <defaults>
</compile_context>

<pallas_src>
import functools

import jax
import jax.numpy as jnp
import numpy as np
from jax.experimental import pallas as pl
from jax.experimental.pallas import tpu as pltpu


def _topk_kernel(q_ref, k_ref, v_ref, out_k_ref, out_v_ref, *,
                 num_neighbors, num_caches, num_queries, cache_size,
                 k_features, v_features):
    # q_ref:     (nq, nc*kf)
    # k_ref:     (cs, nc*kf)
    # v_ref:     (cs, nc*vf)
    # out_k_ref: (nq, nc*nn*kf)
    # out_v_ref: (nq, nc*nn*vf)
    nn = num_neighbors
    nq = num_queries
    cs = cache_size
    kf = k_features
    vf = v_features

    q = q_ref[...]            # native dtype, no up-cast (MXU accumulates in f32)
    k = k_ref[...]
    v = v_ref[...]
    mm_dtype = k.dtype

    # Hoisted out of the head / neighbor loops.
    cache_iota = jax.lax.broadcasted_iota(jnp.int32, (nq, cs), 1)

    for h in range(num_caches):          # static unroll: no per-head grid overhead
        q_h = q[:, h * kf:(h + 1) * kf]  # (nq, kf)
        k_h = k[:, h * kf:(h + 1) * kf]  # (cs, kf)
        v_h = v[:, h * vf:(h + 1) * vf]  # (cs, vf)

        # Similarity scores on the MXU: (nq, cs), f32 accumulation.
        scores = jax.lax.dot_general(
            q_h, k_h, dimension_numbers=(((1,), (1,)), ((), ())),
            preferred_element_type=jnp.float32)

        # Iterative top-k selection: one XLU argmax + one VPU select per
        # neighbor. Collect the one-hot rows, gather with ONE fused matmul.
        onehots = []
        for n in range(nn):
            idx = jnp.argmax(scores, axis=-1)            # (nq,)
            onehot = cache_iota == idx[:, None]          # (nq, cs) bool
            onehots.append(onehot.astype(mm_dtype))
            scores = jnp.where(onehot, jnp.float32(-1e30), scores)

        sel = jnp.concatenate(onehots, axis=0)           # (nn*nq, cs)
        sel_k = jnp.dot(sel, k_h, preferred_element_type=jnp.float32)  # (nn*nq, kf)
        sel_v = jnp.dot(sel, v_h, preferred_element_type=jnp.float32)  # (nn*nq, vf)

        # Re-order neighbor-major rows into a lane-dense (nq, nn*feat) block:
        # aligned sublane slices + lane concatenation only (no reshapes).
        out_k = jnp.concatenate(
            [sel_k[n * nq:(n + 1) * nq, :] for n in range(nn)], axis=-1)
        out_v = jnp.concatenate(
            [sel_v[n * nq:(n + 1) * nq, :] for n in range(nn)], axis=-1)

        # One lane-dense, 128-aligned store per head per output.
        out_k_ref[:, h * nn * kf:(h + 1) * nn * kf] = out_k.astype(out_k_ref.dtype)
        out_v_ref[:, h * nn * vf:(h + 1) * nn * vf] = out_v.astype(out_v_ref.dtype)


def topk_retrieval(query, cache_keys, cache_values, num_neighbors):
    """Pallas-backed Cache.forward (topk_retrieval).

    Args:
      query:        (num_queries, num_caches, k_features)
      cache_keys:   (cache_size,  num_caches, k_features)
      cache_values: (cache_size,  num_caches, v_features)
      num_neighbors: static int (must be <= cache_size)

    Returns:
      selected_keys:   (num_queries, num_caches, num_neighbors, k_features)
      selected_values: (num_queries, num_caches, num_neighbors, v_features)
    """
    nq, nc, kf = query.shape
    cs, _, vf = cache_values.shape
    nn = num_neighbors
    assert nn <= cs, "num_neighbors must not exceed cache_size"

    # Free, contiguous trailing-dim collapses (no HBM transpose passes).
    q2 = query.reshape(nq, nc * kf)
    k2 = cache_keys.reshape(cs, nc * kf)
    v2 = cache_values.reshape(cs, nc * vf)

    kernel = functools.partial(
        _topk_kernel, num_neighbors=nn, num_caches=nc, num_queries=nq,
        cache_size=cs, k_features=kf, v_features=vf)

    itemsize = jnp.dtype(query.dtype).itemsize
    cost = pl.CostEstimate(
        flops=2 * nc * nq * cs * kf + 2 * nc * (nn * nq) * cs * (kf + vf),
        transcendentals=0,
        bytes_accessed=(q2.size + k2.size + v2.size
                        + nq * nc * nn * (kf + vf)) * itemsize,
    )

    out_k2, out_v2 = pl.pallas_call(
        kernel,
        out_shape=(
            jax.ShapeDtypeStruct((nq, nc * nn * kf), query.dtype),
            jax.ShapeDtypeStruct((nq, nc * nn * vf), query.dtype),
        ),
        grid_spec=pltpu.PrefetchScalarGridSpec(
            num_scalar_prefetch=0,
            grid=(1,),  # all heads handled in one step: no grid-step overhead
            in_specs=[
                pl.BlockSpec((nq, nc * kf), lambda i: (0, 0)),
                pl.BlockSpec((cs, nc * kf), lambda i: (0, 0)),
                pl.BlockSpec((cs, nc * vf), lambda i: (0, 0)),
            ],
            out_specs=[
                pl.BlockSpec((nq, nc * nn * kf), lambda i: (0, 0)),
                pl.BlockSpec((nq, nc * nn * vf), lambda i: (0, 0)),
            ],
        ),
        compiler_params=pltpu.CompilerParams(
            dimension_semantics=("arbitrary",)),
        cost_estimate=cost,
    )(q2, k2, v2)

    # Free contiguous splits back to the PyTorch axis convention.
    sel_keys = out_k2.reshape(nq, nc, nn, kf)
    sel_values = out_v2.reshape(nq, nc, nn, vf)
    return sel_keys, sel_values


def _reference_topk(query, cache_keys, cache_values, num_neighbors):
    # Pure-JAX reference for correctness checking.
    scores = jnp.einsum("qhd,khd->hqk", query.astype(jnp.float32),
                        cache_keys.astype(jnp.float32))
    _, idx = jax.lax.top_k(scores, num_neighbors)            # (nc, nq, nn)
    k_t = jnp.transpose(cache_keys, (1, 0, 2))               # (nc, cs, kf)
    v_t = jnp.transpose(cache_values, (1, 0, 2))             # (nc, cs, vf)
    sel_k = jnp.take_along_axis(k_t[:, None], idx[..., None], axis=2)
    sel_v = jnp.take_along_axis(v_t[:, None], idx[..., None], axis=2)
    return (jnp.transpose(sel_k, (1, 0, 2, 3)).astype(query.dtype),
            jnp.transpose(sel_v, (1, 0, 2, 3)).astype(query.dtype))


if __name__ == "__main__":
    # Small, deterministic synthetic setup (the Cache "state"; Cache.__init__
    # only stores num_caches, so keys/values are initialized here).
    num_queries = 8
    num_caches = 2
    k_features = 32
    v_features = 32
    cache_size = 16
    num_neighbors = 4

    key = jax.random.PRNGKey(0)
    kq, kk, kv = jax.random.split(key, 3)
    query = jax.random.normal(kq, (num_queries, num_caches, k_features),
                              dtype=jnp.float32)
    cache_keys = jax.random.normal(kk, (cache_size, num_caches, k_features),
                                   dtype=jnp.float32)
    cache_values = jax.random.normal(kv, (cache_size, num_caches, v_features),
                                     dtype=jnp.float32)

    sel_k, sel_v = topk_retrieval(query, cache_keys, cache_values,
                                  num_neighbors)
    jax.block_until_ready((sel_k, sel_v))

    ref_k, ref_v = _reference_topk(query, cache_keys, cache_values,
                                   num_neighbors)
    np.testing.assert_allclose(np.asarray(sel_k), np.asarray(ref_k),
                               rtol=1e-5, atol=1e-5)
    np.testing.assert_allclose(np.asarray(sel_v), np.asarray(ref_v),
                               rtol=1e-5, atol=1e-5)

    assert sel_k.shape == (num_queries, num_caches, num_neighbors, k_features)
    assert sel_v.shape == (num_queries, num_caches, num_neighbors, v_features)

    print("KERNEL_OK")
</pallas_src>

<mosaic_0001>
module attributes {stable_mosaic.version = 11 : i64} {
  func.func @_topk_kernel(%arg0: i32, %arg1: memref<8x64xf32, #tpu.memory_space<vmem>>, %arg2: memref<16x64xf32, #tpu.memory_space<vmem>>, %arg3: memref<16x64xf32, #tpu.memory_space<vmem>>, %arg4: memref<8x256xf32, #tpu.memory_space<vmem>>, %arg5: memref<8x256xf32, #tpu.memory_space<vmem>>) attributes {dimension_semantics = [#tpu.dimension_semantics<arbitrary>], iteration_bounds = array<i64: 1>, scalar_prefetch = 0 : i64, scratch_operands = 0 : i64, tpu.core_type = #tpu.core_type<tc>, window_params = [{pipeline_mode = #tpu.pipeline_mode<synchronous>, transform_indices = @transform_0, window_bounds = array<i64: 8, 64>}, {pipeline_mode = #tpu.pipeline_mode<synchronous>, transform_indices = @transform_1, window_bounds = array<i64: 16, 64>}, {pipeline_mode = #tpu.pipeline_mode<synchronous>, transform_indices = @transform_2, window_bounds = array<i64: 16, 64>}, {pipeline_mode = #tpu.pipeline_mode<synchronous>, transform_indices = @transform_3, window_bounds = array<i64: 8, 256>}, {pipeline_mode = #tpu.pipeline_mode<synchronous>, transform_indices = @transform_4, window_bounds = array<i64: 8, 256>}]} {
    %c0 = arith.constant 0 : index
    %c0_0 = arith.constant 0 : index
    %0 = vector.load %arg1[%c0, %c0_0] : memref<8x64xf32, #tpu.memory_space<vmem>>, vector<8x64xf32>
    %c0_1 = arith.constant 0 : index
    %c0_2 = arith.constant 0 : index
    %1 = vector.load %arg2[%c0_1, %c0_2] : memref<16x64xf32, #tpu.memory_space<vmem>>, vector<16x64xf32>
    %c0_3 = arith.constant 0 : index
    %c0_4 = arith.constant 0 : index
    %2 = vector.load %arg3[%c0_3, %c0_4] : memref<16x64xf32, #tpu.memory_space<vmem>>, vector<16x64xf32>
    %3 = tpu.iota {dimensions = array<i32: 1>} : vector<8x16xi32>
    %4 = vector.extract_strided_slice %0 {offsets = [0, 0], sizes = [8, 32], strides = [1, 1]} : vector<8x64xf32> to vector<8x32xf32>
    %5 = vector.extract_strided_slice %1 {offsets = [0, 0], sizes = [16, 32], strides = [1, 1]} : vector<16x64xf32> to vector<16x32xf32>
    %6 = vector.extract_strided_slice %2 {offsets = [0, 0], sizes = [16, 32], strides = [1, 1]} : vector<16x64xf32> to vector<16x32xf32>
    %cst = arith.constant dense<0.000000e+00> : vector<8x16xf32>
    %7 = tpu.matmul %4, %5, %cst {dimension_numbers = #tpu.dot_dimension_numbers<[1], [1], [0], [0], [0, 0, 1, 0], [], []>} : vector<8x32xf32>, vector<16x32xf32>, vector<8x16xf32> -> vector<8x16xf32>
    %8 = tpu.reduce_index %7 {axis = 1 : i32, kind = #tpu.reduction_kind<arg_max>} : vector<8x16xf32> -> vector<8xi32>
    %9 = vector.shape_cast %8 : vector<8xi32> to vector<8x1xi32>
    %10 = vector.broadcast %9 : vector<8x1xi32> to vector<8x16xi32>
    %11 = arith.cmpi eq, %3, %10 : vector<8x16xi32>
    %12 = arith.extui %11 : vector<8x16xi1> to vector<8x16xi32>
    %13 = arith.sitofp %12 : vector<8x16xi32> to vector<8x16xf32>
    %cst_5 = arith.constant -1.000000e+30 : f32
    %14 = vector.broadcast %cst_5 : f32 to vector<8x16xf32>
    %15 = arith.select %11, %14, %7 : vector<8x16xi1>, vector<8x16xf32>
    %16 = tpu.reduce_index %15 {axis = 1 : i32, kind = #tpu.reduction_kind<arg_max>} : vector<8x16xf32> -> vector<8xi32>
    %17 = vector.shape_cast %16 : vector<8xi32> to vector<8x1xi32>
    %18 = vector.broadcast %17 : vector<8x1xi32> to vector<8x16xi32>
    %19 = arith.cmpi eq, %3, %18 : vector<8x16xi32>
    %20 = arith.extui %19 : vector<8x16xi1> to vector<8x16xi32>
    %21 = arith.sitofp %20 : vector<8x16xi32> to vector<8x16xf32>
    %cst_6 = arith.constant -1.000000e+30 : f32
    %22 = vector.broadcast %cst_6 : f32 to vector<8x16xf32>
    %23 = arith.select %19, %22, %15 : vector<8x16xi1>, vector<8x16xf32>
    %24 = tpu.reduce_index %23 {axis = 1 : i32, kind = #tpu.reduction_kind<arg_max>} : vector<8x16xf32> -> vector<8xi32>
    %25 = vector.shape_cast %24 : vector<8xi32> to vector<8x1xi32>
    %26 = vector.broadcast %25 : vector<8x1xi32> to vector<8x16xi32>
    %27 = arith.cmpi eq, %3, %26 : vector<8x16xi32>
    %28 = arith.extui %27 : vector<8x16xi1> to vector<8x16xi32>
    %29 = arith.sitofp %28 : vector<8x16xi32> to vector<8x16xf32>
    %cst_7 = arith.constant -1.000000e+30 : f32
    %30 = vector.broadcast %cst_7 : f32 to vector<8x16xf32>
    %31 = arith.select %27, %30, %23 : vector<8x16xi1>, vector<8x16xf32>
    %32 = tpu.reduce_index %31 {axis = 1 : i32, kind = #tpu.reduction_kind<arg_max>} : vector<8x16xf32> -> vector<8xi32>
    %33 = vector.shape_cast %32 : vector<8xi32> to vector<8x1xi32>
    %34 = vector.broadcast %33 : vector<8x1xi32> to vector<8x16xi32>
    %35 = arith.cmpi eq, %3, %34 : vector<8x16xi32>
    %36 = arith.extui %35 : vector<8x16xi1> to vector<8x16xi32>
    %37 = arith.sitofp %36 : vector<8x16xi32> to vector<8x16xf32>
    %38 = tpu.concatenate %13, %21, %29, %37 in 0 : vector<8x16xf32>, vector<8x16xf32>, vector<8x16xf32>, vector<8x16xf32> -> vector<32x16xf32>
    %cst_8 = arith.constant dense<0.000000e+00> : vector<32x32xf32>
    %39 = tpu.matmul %38, %5, %cst_8 {dimension_numbers = #tpu.dot_dimension_numbers<[1], [0], [0], [1], [0, 0, 1, 1], [], []>} : vector<32x16xf32>, vector<16x32xf32>, vector<32x32xf32> -> vector<32x32xf32>
    %cst_9 = arith.constant dense<0.000000e+00> : vector<32x32xf32>
    %40 = tpu.matmul %38, %6, %cst_9 {dimension_numbers = #tpu.dot_dimension_numbers<[1], [0], [0], [1], [0, 0, 1, 1], [], []>} : vector<32x16xf32>, vector<16x32xf32>, vector<32x32xf32> -> vector<32x32xf32>
    %41 = vector.extract_strided_slice %39 {offsets = [0, 0], sizes = [8, 32], strides = [1, 1]} : vector<32x32xf32> to vector<8x32xf32>
    %42 = vector.extract_strided_slice %39 {offsets = [8, 0], sizes = [8, 32], strides = [1, 1]} : vector<32x32xf32> to vector<8x32xf32>
    %43 = vector.extract_strided_slice %39 {offsets = [16, 0], sizes = [8, 32], strides = [1, 1]} : vector<32x32xf32> to vector<8x32xf32>
    %44 = vector.extract_strided_slice %39 {offsets = [24, 0], sizes = [8, 32], strides = [1, 1]} : vector<32x32xf32> to vector<8x32xf32>
    %45 = tpu.concatenate %41, %42, %43, %44 in 1 : vector<8x32xf32>, vector<8x32xf32>, vector<8x32xf32>, vector<8x32xf32> -> vector<8x128xf32>
    %46 = vector.extract_strided_slice %40 {offsets = [0, 0], sizes = [8, 32], strides = [1, 1]} : vector<32x32xf32> to vector<8x32xf32>
    %47 = vector.extract_strided_slice %40 {offsets = [8, 0], sizes = [8, 32], strides = [1, 1]} : vector<32x32xf32> to vector<8x32xf32>
    %48 = vector.extract_strided_slice %40 {offsets = [16, 0], sizes = [8, 32], strides = [1, 1]} : vector<32x32xf32> to vector<8x32xf32>
    %49 = vector.extract_strided_slice %40 {offsets = [24, 0], sizes = [8, 32], strides = [1, 1]} : vector<32x32xf32> to vector<8x32xf32>
    %50 = tpu.concatenate %46, %47, %48, %49 in 1 : vector<8x32xf32>, vector<8x32xf32>, vector<8x32xf32>, vector<8x32xf32> -> vector<8x128xf32>
    %c0_10 = arith.constant 0 : index
    %c0_11 = arith.constant 0 : index
    %51 = vector.load %arg4[%c0_10, %c0_11] : memref<8x256xf32, #tpu.memory_space<vmem>>, vector<8x128xf32>
    tpu.vector_store %arg4[%c0_10, %c0_11], %45 {strides = array<i32>} : memref<8x256xf32, #tpu.memory_space<vmem>>, vector<8x128xf32>,
    %c0_12 = arith.constant 0 : index
    %c0_13 = arith.constant 0 : index
    %52 = vector.load %arg5[%c0_12, %c0_13] : memref<8x256xf32, #tpu.memory_space<vmem>>, vector<8x128xf32>
    tpu.vector_store %arg5[%c0_12, %c0_13], %50 {strides = array<i32>} : memref<8x256xf32, #tpu.memory_space<vmem>>, vector<8x128xf32>,
    %53 = vector.extract_strided_slice %0 {offsets = [0, 32], sizes = [8, 32], strides = [1, 1]} : vector<8x64xf32> to vector<8x32xf32>
    %54 = vector.extract_strided_slice %1 {offsets = [0, 32], sizes = [16, 32], strides = [1, 1]} : vector<16x64xf32> to vector<16x32xf32>
    %55 = vector.extract_strided_slice %2 {offsets = [0, 32], sizes = [16, 32], strides = [1, 1]} : vector<16x64xf32> to vector<16x32xf32>
    %cst_14 = arith.constant dense<0.000000e+00> : vector<8x16xf32>
    %56 = tpu.matmul %53, %54, %cst_14 {dimension_numbers = #tpu.dot_dimension_numbers<[1], [1], [0], [0], [0, 0, 1, 0], [], []>} : vector<8x32xf32>, vector<16x32xf32>, vector<8x16xf32> -> vector<8x16xf32>
    %57 = tpu.reduce_index %56 {axis = 1 : i32, kind = #tpu.reduction_kind<arg_max>} : vector<8x16xf32> -> vector<8xi32>
    %58 = vector.shape_cast %57 : vector<8xi32> to vector<8x1xi32>
    %59 = vector.broadcast %58 : vector<8x1xi32> to vector<8x16xi32>
    %60 = arith.cmpi eq, %3, %59 : vector<8x16xi32>
    %61 = arith.extui %60 : vector<8x16xi1> to vector<8x16xi32>
    %62 = arith.sitofp %61 : vector<8x16xi32> to vector<8x16xf32>
    %cst_15 = arith.constant -1.000000e+30 : f32
    %63 = vector.broadcast %cst_15 : f32 to vector<8x16xf32>
    %64 = arith.select %60, %63, %56 : vector<8x16xi1>, vector<8x16xf32>
    %65 = tpu.reduce_index %64 {axis = 1 : i32, kind = #tpu.reduction_kind<arg_max>} : vector<8x16xf32> -> vector<8xi32>
    %66 = vector.shape_cast %65 : vector<8xi32> to vector<8x1xi32>
    %67 = vector.broadcast %66 : vector<8x1xi32> to vector<8x16xi32>
    %68 = arith.cmpi eq, %3, %67 : vector<8x16xi32>
    %69 = arith.extui %68 : vector<8x16xi1> to vector<8x16xi32>
    %70 = arith.sitofp %69 : vector<8x16xi32> to vector<8x16xf32>
    %cst_16 = arith.constant -1.000000e+30 : f32
    %71 = vector.broadcast %cst_16 : f32 to vector<8x16xf32>
    %72 = arith.select %68, %71, %64 : vector<8x16xi1>, vector<8x16xf32>
    %73 = tpu.reduce_index %72 {axis = 1 : i32, kind = #tpu.reduction_kind<arg_max>} : vector<8x16xf32> -> vector<8xi32>
    %74 = vector.shape_cast %73 : vector<8xi32> to vector<8x1xi32>
    %75 = vector.broadcast %74 : vector<8x1xi32> to vector<8x16xi32>
    %76 = arith.cmpi eq, %3, %75 : vector<8x16xi32>
    %77 = arith.extui %76 : vector<8x16xi1> to vector<8x16xi32>
    %78 = arith.sitofp %77 : vector<8x16xi32> to vector<8x16xf32>
    %cst_17 = arith.constant -1.000000e+30 : f32
    %79 = vector.broadcast %cst_17 : f32 to vector<8x16xf32>
    %80 = arith.select %76, %79, %72 : vector<8x16xi1>, vector<8x16xf32>
    %81 = tpu.reduce_index %80 {axis = 1 : i32, kind = #tpu.reduction_kind<arg_max>} : vector<8x16xf32> -> vector<8xi32>
    %82 = vector.shape_cast %81 : vector<8xi32> to vector<8x1xi32>
    %83 = vector.broadcast %82 : vector<8x1xi32> to vector<8x16xi32>
    %84 = arith.cmpi eq, %3, %83 : vector<8x16xi32>
    %85 = arith.extui %84 : vector<8x16xi1> to vector<8x16xi32>
    %86 = arith.sitofp %85 : vector<8x16xi32> to vector<8x16xf32>
    %87 = tpu.concatenate %62, %70, %78, %86 in 0 : vector<8x16xf32>, vector<8x16xf32>, vector<8x16xf32>, vector<8x16xf32> -> vector<32x16xf32>
    %cst_18 = arith.constant dense<0.000000e+00> : vector<32x32xf32>
    %88 = tpu.matmul %87, %54, %cst_18 {dimension_numbers = #tpu.dot_dimension_numbers<[1], [0], [0], [1], [0, 0, 1, 1], [], []>} : vector<32x16xf32>, vector<16x32xf32>, vector<32x32xf32> -> vector<32x32xf32>
    %cst_19 = arith.constant dense<0.000000e+00> : vector<32x32xf32>
    %89 = tpu.matmul %87, %55, %cst_19 {dimension_numbers = #tpu.dot_dimension_numbers<[1], [0], [0], [1], [0, 0, 1, 1], [], []>} : vector<32x16xf32>, vector<16x32xf32>, vector<32x32xf32> -> vector<32x32xf32>
    %90 = vector.extract_strided_slice %88 {offsets = [0, 0], sizes = [8, 32], strides = [1, 1]} : vector<32x32xf32> to vector<8x32xf32>
    %91 = vector.extract_strided_slice %88 {offsets = [8, 0], sizes = [8, 32], strides = [1, 1]} : vector<32x32xf32> to vector<8x32xf32>
    %92 = vector.extract_strided_slice %88 {offsets = [16, 0], sizes = [8, 32], strides = [1, 1]} : vector<32x32xf32> to vector<8x32xf32>
    %93 = vector.extract_strided_slice %88 {offsets = [24, 0], sizes = [8, 32], strides = [1, 1]} : vector<32x32xf32> to vector<8x32xf32>
    %94 = tpu.concatenate %90, %91, %92, %93 in 1 : vector<8x32xf32>, vector<8x32xf32>, vector<8x32xf32>, vector<8x32xf32> -> vector<8x128xf32>
    %95 = vector.extract_strided_slice %89 {offsets = [0, 0], sizes = [8, 32], strides = [1, 1]} : vector<32x32xf32> to vector<8x32xf32>
    %96 = vector.extract_strided_slice %89 {offsets = [8, 0], sizes = [8, 32], strides = [1, 1]} : vector<32x32xf32> to vector<8x32xf32>
    %97 = vector.extract_strided_slice %89 {offsets = [16, 0], sizes = [8, 32], strides = [1, 1]} : vector<32x32xf32> to vector<8x32xf32>
    %98 = vector.extract_strided_slice %89 {offsets = [24, 0], sizes = [8, 32], strides = [1, 1]} : vector<32x32xf32> to vector<8x32xf32>
    %99 = tpu.concatenate %95, %96, %97, %98 in 1 : vector<8x32xf32>, vector<8x32xf32>, vector<8x32xf32>, vector<8x32xf32> -> vector<8x128xf32>
    %c0_20 = arith.constant 0 : index
    %c128 = arith.constant 128 : index
    %100 = vector.load %arg4[%c0_20, %c128] : memref<8x256xf32, #tpu.memory_space<vmem>>, vector<8x128xf32>
    tpu.vector_store %arg4[%c0_20, %c128], %94 {strides = array<i32>} : memref<8x256xf32, #tpu.memory_space<vmem>>, vector<8x128xf32>,
    %c0_21 = arith.constant 0 : index
    %c128_22 = arith.constant 128 : index
    %101 = vector.load %arg5[%c0_21, %c128_22] : memref<8x256xf32, #tpu.memory_space<vmem>>, vector<8x128xf32>
    tpu.vector_store %arg5[%c0_21, %c128_22], %99 {strides = array<i32>} : memref<8x256xf32, #tpu.memory_space<vmem>>, vector<8x128xf32>,
    return
  }
  func.func @transform_0(%arg0: i32) -> (i32, i32) {
    %c0_i32 = arith.constant 0 : i32
    %c0_i32_0 = arith.constant 0 : i32
    %c0_i32_1 = arith.constant 0 : i32
    return %c0_i32, %c0_i32_0 : i32, i32
  }
  func.func @transform_1(%arg0: i32) -> (i32, i32) {
    %c0_i32 = arith.constant 0 : i32
    %c0_i32_0 = arith.constant 0 : i32
    %c0_i32_1 = arith.constant 0 : i32
    return %c0_i32, %c0_i32_0 : i32, i32
  }
  func.func @transform_2(%arg0: i32) -> (i32, i32) {
    %c0_i32 = arith.constant 0 : i32
    %c0_i32_0 = arith.constant 0 : i32
    %c0_i32_1 = arith.constant 0 : i32
    return %c0_i32, %c0_i32_0 : i32, i32
  }
  func.func @transform_3(%arg0: i32) -> (i32, i32) {
    %c0_i32 = arith.constant 0 : i32
    %c0_i32_0 = arith.constant 0 : i32
    %c0_i32_1 = arith.constant 0 : i32
    return %c0_i32, %c0_i32_0 : i32, i32
  }
  func.func @transform_4(%arg0: i32) -> (i32, i32) {
    %c0_i32 = arith.constant 0 : i32
    %c0_i32_0 = arith.constant 0 : i32
    %c0_i32_1 = arith.constant 0 : i32
    return %c0_i32, %c0_i32_0 : i32, i32
  }
}

</mosaic_0001>

<llo_original>
// kernel: tpu_custom_call.1
$region0: #{tpu_custom_call.1}
  #allocation0 [shape = 'u32[]', space=smem, size = 0x4, offset = 0x4, fixed_abs, tag = 'smem constant byte address 0x4 - core index']
  #allocation1 [shape = 'u32[144,128]{1,0:T(1,128)}', space=vmem, size = 0x12000, scoped, tag = 'internal scratch']
  %s0 = inlined_call_operand.hbm [shape: f32[8,64], index: 0, kind: input, shape index: {}]
  %s1 = inlined_call_operand.hbm [shape: f32[16,64], index: 1, kind: input, shape index: {}]
  %s2 = inlined_call_operand.hbm [shape: f32[16,64], index: 2, kind: input, shape index: {}]
  %s3 = inlined_call_operand.hbm [shape: f32[8,256], index: 3, kind: output, shape index: {0}]
  %s4 = inlined_call_operand.hbm [shape: f32[8,256], index: 4, kind: output, shape index: {1}]
  %5 = xla_tuple %s3, %s4
  %s6 = sld [smem:[#allocation0]]
  $region42: #{tpu_custom_call.1} parent=0
    _
  %s8 = ssub.s32 1, %s6
  %s9 = scalar_select 0, %s8, %s6
  $region1: #{tpu_custom_call.1} parent=0
    #allocation2 [shape = 'u8[4096]{0}', space=vmem, size = 0x1000, scoped, tag = 'input window, operand 0, single buffered']
    #allocation3 [shape = 's32[1]{0}', space=sflag, size = 0x4, scoped, tag = 'scoped memory for tpu_custom_call.1']
    #allocation4 [shape = 's32[1]{0}', space=sflag, size = 0x4, scoped, tag = 'scoped memory for tpu_custom_call.1']
    #allocation5 [shape = 'u8[8192]{0}', space=vmem, size = 0x2000, scoped, tag = 'input window, operand 1, single buffered']
    #allocation6 [shape = 's32[1]{0}', space=sflag, size = 0x4, scoped, tag = 'scoped memory for tpu_custom_call.1']
    #allocation7 [shape = 'u8[8192]{0}', space=vmem, size = 0x2000, scoped, tag = 'input window, operand 2, single buffered']
    #allocation8 [shape = 'u8[8192]{0}', space=vmem, size = 0x2000, scoped, tag = 'output window, operand 0, single buffered']
    #allocation9 [shape = 'u8[8192]{0}', space=vmem, size = 0x2000, scoped, tag = 'output window, operand 1, single buffered']
    #allocation10 [shape = 's32[1]{0}', space=sflag, size = 0x4, scoped, tag = 'scoped memory for tpu_custom_call.1']
    %10 = vsyncpa [#allocation3], 0
    %11 = vsyncpa [#allocation6], 0
    %12 = vsyncpa [#allocation4], 0
    %13 = vsyncpa [#allocation10], 0
    // Predicated region
    $region2: #{tpu_custom_call.1} parent=1 // pred_check
      _
    $region3: #{tpu_custom_call.1} parent=1 // pred_check_branch
      %15 = sbr.rel (0) target = $region5
    $region4: #{tpu_custom_call.1} parent=1 // pred_region
      %s17 = ssub.s32 128, 128
      %18 = vsyncadd [#allocation3], %s17
      %s20 = sshll.u32 [#allocation2], 4
      %s21 = int_to_ptr.vmem [resolvable:$true] %s20
      %23 = dma.hbm_to_vmem [thread:$0]  %s0, 128, %s21, [#allocation3]
    $region5: #{tpu_custom_call.1} parent=1 // pred_fallthru
      _
    // Predicated region
    $region6: #{tpu_custom_call.1} parent=1 // pred_check
      _
    $region7: #{tpu_custom_call.1} parent=1 // pred_check_branch
      %25 = sbr.rel (0) target = $region9
    $region8: #{tpu_custom_call.1} parent=1 // pred_region
      %s27 = ssub.s32 256, 256
      %28 = vsyncadd [#allocation6], %s27
      %s29 = sshll.u32 [#allocation5], 4
      %s30 = int_to_ptr.vmem [resolvable:$true] %s29
      %35 = dma.hbm_to_vmem [thread:$0]  %s1, 256, %s30, [#allocation6], 128, 128, 8
    $region9: #{tpu_custom_call.1} parent=1 // pred_fallthru
      _
    // Predicated region
    $region10: #{tpu_custom_call.1} parent=1 // pred_check
      _
    $region11: #{tpu_custom_call.1} parent=1 // pred_check_branch
      %37 = sbr.rel (0) target = $region13
    $region12: #{tpu_custom_call.1} parent=1 // pred_region
      %s39 = ssub.s32 256, 256
      %40 = vsyncadd [#allocation6], %s39
      %s41 = sshll.u32 [#allocation7], 4
      %s42 = int_to_ptr.vmem [resolvable:$true] %s41
      %47 = dma.hbm_to_vmem [thread:$0]  %s2, 256, %s42, [#allocation6], 128, 128, 8
    $region13: #{tpu_custom_call.1} parent=1 // pred_fallthru
      _
    // Predicated region
    $region14: #{tpu_custom_call.1} parent=1 // pred_check
      _
    $region15: #{tpu_custom_call.1} parent=1 // pred_check_branch
      %49 = sbr.rel (0) target = $region17
    $region16: #{tpu_custom_call.1} parent=1 // pred_region
      %50 = dma.done [#allocation3], 128
    $region17: #{tpu_custom_call.1} parent=1 // pred_fallthru
      _
    // Predicated region
    $region18: #{tpu_custom_call.1} parent=1 // pred_check
      _
    $region19: #{tpu_custom_call.1} parent=1 // pred_check_branch
      %52 = sbr.rel (0) target = $region21
    $region20: #{tpu_custom_call.1} parent=1 // pred_region
      %53 = dma.done [#allocation6], 256
    $region21: #{tpu_custom_call.1} parent=1 // pred_fallthru
      _
    // Predicated region
    $region22: #{tpu_custom_call.1} parent=1 // pred_check
      _
    $region23: #{tpu_custom_call.1} parent=1 // pred_check_branch
      %55 = sbr.rel (0) target = $region25
    $region24: #{tpu_custom_call.1} parent=1 // pred_region
      %56 = dma.done [#allocation6], 256
    $region25: #{tpu_custom_call.1} parent=1 // pred_fallthru
      _
    %v57 = vld [vmem:[#allocation2] sm:$0xff]
    %v58 = vld [vmem:[#allocation5] sm:$0xff]
    %v59 = vld [vmem:[#allocation5 + $0x8] sm:$0xff]
    %v60 = vld [vmem:[#allocation7] sm:$0xff]
    %v61 = vld [vmem:[#allocation7 + $0x8] sm:$0xff]
    %v62 = vlaneseq
    %v63 = vand.u32 %v62, 127
    %vm64 = vcmask 261120
    %v66 = vsel %vm64, %v57, 0
    %v69 = vsel %vm64, %v58, 0
    %v72 = vsel %vm64, %v59, 0
    %74 = vmatprep.subr.mxu0 0.0
    %75 = vmatpush1.xpose.msra.mxu0 %v69
    %76 = vmatprep.subr.mxu0 0.0
    %77 = vmatpush1.xpose.msra.mxu0 %v72
    %78 = vmatprep.subr.mxu0 0.0
    %79 = vmatpush1.xpose.msra.mxu0 0.0
    %80 = vmatprep.subr.mxu0 0.0
    %81 = vmatpush1.xpose.msra.mxu0 0.0
    %82 = vmatprep.subr.mxu0 0.0
    %83 = vmatpush1.xpose.msra.mxu0 0.0
    %84 = vmatprep.subr.mxu0 0.0
    %85 = vmatpush1.xpose.msra.mxu0 0.0
    %86 = vmatprep.subr.mxu0 0.0
    %87 = vmatpush1.xpose.msra.mxu0 0.0
    %88 = vmatprep.subr.mxu0 0.0
    %89 = vmatpush1.xpose.msra.mxu0 0.0
    %90 = vmatprep.subr.mxu0 0.0
    %91 = vmatpush1.xpose.msra.mxu0 0.0
    %92 = vmatprep.subr.mxu0 0.0
    %93 = vmatpush1.xpose.msra.mxu0 0.0
    %94 = vmatprep.subr.mxu0 0.0
    %95 = vmatpush1.xpose.msra.mxu0 0.0
    %96 = vmatprep.subr.mxu0 0.0
    %97 = vmatpush1.xpose.msra.mxu0 0.0
    %98 = vmatprep.subr.mxu0 0.0
    %99 = vmatpush1.xpose.msra.mxu0 0.0
    %100 = vmatprep.subr.mxu0 0.0
    %101 = vmatpush1.xpose.msra.mxu0 0.0
    %102 = vmatprep.subr.mxu0 0.0
    %103 = vmatpush1.xpose.msra.mxu0 0.0
    %104 = vmatprep.subr.mxu0 0.0
    %105 = vmatpush1.xpose.msra.mxu0 0.0
    %106 = vmatprep.subr.mxu0 0.0
    %107 = vmatpush1.xpose.msra.mxu0 0.0
    %108 = vmatprep.subr.mxu0 0.0
    %109 = vmatpush1.xpose.msra.mxu0 0.0
    %110 = vmatprep.subr.mxu0 0.0
    %111 = vmatpush1.xpose.msra.mxu0 0.0
    %112 = vmatprep.subr.mxu0 0.0
    %113 = vmatpush1.xpose.msra.mxu0 0.0
    %114 = vmatprep.subr.mxu0 0.0
    %115 = vmatpush1.xpose.msra.mxu0 0.0
    %116 = vmatprep.subr.mxu0 0.0
    %117 = vmatpush1.xpose.msra.mxu0 0.0
    %118 = vmatprep.subr.mxu0 0.0
    %119 = vmatpush1.xpose.msra.mxu0 0.0
    %120 = vmatprep.subr.mxu0 0.0
    %121 = vmatpush1.xpose.msra.mxu0 0.0
    %122 = vmatprep.subr.mxu0 0.0
    %123 = vmatpush1.xpose.msra.mxu0 0.0
    %124 = vmatprep.subr.mxu0 0.0
    %125 = vmatpush1.xpose.msra.mxu0 0.0
    %126 = vmatprep.subr.mxu0 0.0
    %127 = vmatpush1.xpose.msra.mxu0 0.0
    %128 = vmatprep.subr.mxu0 0.0
    %129 = vmatpush1.xpose.msra.mxu0 0.0
    %130 = vmatprep.subr.mxu0 0.0
    %131 = vmatpush1.xpose.msra.mxu0 0.0
    %132 = vmatprep.subr.mxu0 0.0
    %133 = vmatpush1.xpose.msra.mxu0 0.0
    %134 = vmatprep.subr.mxu0 0.0
    %135 = vmatpush1.xpose.msra.mxu0 0.0
    %136 = vmatprep.subr.mxu0 0.0
    %137 = vmatpush1.xpose.msra.mxu0 0.0
    %138 = vmatprep.mubr.f32.mxu0 0.0
    %139 = vmatmul.mubr.f32.gmra.mrb[0].mxu0 %v66
    %v140 = vpop.f32.mrb[0].mxu0
    %v141 = vadd.f32 0.0, %v140
    %v142 = vpop.f32.mrb[0].mxu0
    %143 = vdwg.mxu0
    %vm144 = vcmask 130048
    %v145 = vsel %vm144, %v141, -inf
    %146 = vmax.index.xlane.f32.xlu0 %v145
    %v147 = vpop.xlane.xlu0 %146
    %vm148 = vcmp.eq.s32.totalorder %v63, %v147
    %v149 = vsel %vm148, 1, 0
    %v150 = vcvt.s32.f32 %v149
    %v151 = vsel %vm148, -1e+30, %v141
    %v152 = vsel %vm144, %v151, -inf
    %153 = vmax.index.xlane.f32.xlu0 %v152
    %v154 = vpop.xlane.xlu0 %153
    %vm155 = vcmp.eq.s32.totalorder %v63, %v154
    %v156 = vsel %vm155, 1, 0
    %v157 = vcvt.s32.f32 %v156
    %v158 = vsel %vm155, -1e+30, %v151
    %v159 = vsel %vm144, %v158, -inf
    %160 = vmax.index.xlane.f32.xlu0 %v159
    %v161 = vpop.xlane.xlu0 %160
    %vm162 = vcmp.eq.s32.totalorder %v63, %v161
    %v163 = vsel %vm162, 1, 0
    %v164 = vcvt.s32.f32 %v163
    %v165 = vsel %vm162, -1e+30, %v158
    %v166 = vsel %vm144, %v165, -inf
    %167 = vmax.index.xlane.f32.xlu0 %v166
    %v168 = vpop.xlane.xlu0 %167
    %vm169 = vcmp.eq.s32.totalorder %v63, %v168
    %v170 = vsel %vm169, 1, 0
    %v171 = vcvt.s32.f32 %v170
    %v173 = vsel %vm144, %v150, 0
    %v176 = vsel %vm144, %v157, 0
    %v179 = vsel %vm144, %v164, 0
    %v182 = vsel %vm144, %v171, 0
    %184 = vmatprep.subr.mxu0 0.0
    %185 = vmatpush1.msra.mxu0 %v58
    %186 = vmatprep.subr.mxu0 0.0
    %187 = vmatpush1.msra.mxu0 %v59
    %188 = vmatprep.subr.mxu0 0.0
    %189 = vmatpush1.msra.mxu0 0.0
    %190 = vmatprep.subr.mxu0 0.0
    %191 = vmatpush1.msra.mxu0 0.0
    %192 = vmatprep.subr.mxu0 0.0
    %193 = vmatpush1.msra.mxu0 0.0
    %194 = vmatprep.subr.mxu0 0.0
    %195 = vmatpush1.msra.mxu0 0.0
    %196 = vmatprep.subr.mxu0 0.0
    %197 = vmatpush1.msra.mxu0 0.0
    %198 = vmatprep.subr.mxu0 0.0
    %199 = vmatpush1.msra.mxu0 0.0
    %200 = vmatprep.subr.mxu0 0.0
    %201 = vmatpush1.msra.mxu0 0.0
    %202 = vmatprep.subr.mxu0 0.0
    %203 = vmatpush1.msra.mxu0 0.0
    %204 = vmatprep.subr.mxu0 0.0
    %205 = vmatpush1.msra.mxu0 0.0
    %206 = vmatprep.subr.mxu0 0.0
    %207 = vmatpush1.msra.mxu0 0.0
    %208 = vmatprep.subr.mxu0 0.0
    %209 = vmatpush1.msra.mxu0 0.0
    %210 = vmatprep.subr.mxu0 0.0
    %211 = vmatpush1.msra.mxu0 0.0
    %212 = vmatprep.subr.mxu0 0.0
    %213 = vmatpush1.msra.mxu0 0.0
    %214 = vmatprep.subr.mxu0 0.0
    %215 = vmatpush1.msra.mxu0 0.0
    %216 = vmatprep.subr.mxu0 0.0
    %217 = vmatpush1.msra.mxu0 0.0
    %218 = vmatprep.subr.mxu0 0.0
    %219 = vmatpush1.msra.mxu0 0.0
    %220 = vmatprep.subr.mxu0 0.0
    %221 = vmatpush1.msra.mxu0 0.0
    %222 = vmatprep.subr.mxu0 0.0
    %223 = vmatpush1.msra.mxu0 0.0
    %224 = vmatprep.subr.mxu0 0.0
    %225 = vmatpush1.msra.mxu0 0.0
    %226 = vmatprep.subr.mxu0 0.0
    %227 = vmatpush1.msra.mxu0 0.0
    %228 = vmatprep.subr.mxu0 0.0
    %229 = vmatpush1.msra.mxu0 0.0
    %230 = vmatprep.subr.mxu0 0.0
    %231 = vmatpush1.msra.mxu0 0.0
    %232 = vmatprep.subr.mxu0 0.0
    %233 = vmatpush1.msra.mxu0 0.0
    %234 = vmatprep.subr.mxu0 0.0
    %235 = vmatpush1.msra.mxu0 0.0
    %236 = vmatprep.subr.mxu0 0.0
    %237 = vmatpush1.msra.mxu0 0.0
    %238 = vmatprep.subr.mxu0 0.0
    %239 = vmatpush1.msra.mxu0 0.0
    %240 = vmatprep.subr.mxu0 0.0
    %241 = vmatpush1.msra.mxu0 0.0
    %242 = vmatprep.subr.mxu0 0.0
    %243 = vmatpush1.msra.mxu0 0.0
    %244 = vmatprep.subr.mxu0 0.0
    %245 = vmatpush1.msra.mxu0 0.0
    %246 = vmatprep.subr.mxu0 0.0
    %247 = vmatpush1.msra.mxu0 0.0
    %248 = vmatprep.mubr.f32.mxu0 0.0
    %249 = vmatmul.mubr.f32.gmra.mrb[0].mxu0 %v173
    %v250 = vpop.f32.mrb[0].mxu0
    %v251 = vadd.f32 0.0, %v250
    %v252 = vpop.f32.mrb[0].mxu0
    %253 = vmatprep.mubr.f32.mxu0 0.0
    %254 = vmatmul.mubr.f32.gmra.mrb[0].mxu0 %v176
    %v255 = vpop.f32.mrb[0].mxu0
    %v256 = vadd.f32 0.0, %v255
    %v257 = vpop.f32.mrb[0].mxu0
    %258 = vmatprep.mubr.f32.mxu0 0.0
    %259 = vmatmul.mubr.f32.gmra.mrb[0].mxu0 %v179
    %v260 = vpop.f32.mrb[0].mxu0
    %v261 = vadd.f32 0.0, %v260
    %v262 = vpop.f32.mrb[0].mxu0
    %263 = vmatprep.mubr.f32.mxu0 0.0
    %264 = vmatmul.mubr.f32.gmra.mrb[0].mxu0 %v182
    %v265 = vpop.f32.mrb[0].mxu0
    %v266 = vadd.f32 0.0, %v265
    %v267 = vpop.f32.mrb[0].mxu0
    %268 = vdwg.mxu0
    %269 = vmatprep.subr.mxu0 0.0
    %270 = vmatpush1.msra.mxu0 %v60
    %271 = vmatprep.subr.mxu0 0.0
    %272 = vmatpush1.msra.mxu0 %v61
    %273 = vmatprep.subr.mxu0 0.0
    %274 = vmatpush1.msra.mxu0 0.0
    %275 = vmatprep.subr.mxu0 0.0
    %276 = vmatpush1.msra.mxu0 0.0
    %277 = vmatprep.subr.mxu0 0.0
    %278 = vmatpush1.msra.mxu0 0.0
    %279 = vmatprep.subr.mxu0 0.0
    %280 = vmatpush1.msra.mxu0 0.0
    %281 = vmatprep.subr.mxu0 0.0
    %282 = vmatpush1.msra.mxu0 0.0
    %283 = vmatprep.subr.mxu0 0.0
    %284 = vmatpush1.msra.mxu0 0.0
    %285 = vmatprep.subr.mxu0 0.0
    %286 = vmatpush1.msra.mxu0 0.0
    %287 = vmatprep.subr.mxu0 0.0
    %288 = vmatpush1.msra.mxu0 0.0
    %289 = vmatprep.subr.mxu0 0.0
    %290 = vmatpush1.msra.mxu0 0.0
    %291 = vmatprep.subr.mxu0 0.0
    %292 = vmatpush1.msra.mxu0 0.0
    %293 = vmatprep.subr.mxu0 0.0
    %294 = vmatpush1.msra.mxu0 0.0
    %295 = vmatprep.subr.mxu0 0.0
    %296 = vmatpush1.msra.mxu0 0.0
    %297 = vmatprep.subr.mxu0 0.0
    %298 = vmatpush1.msra.mxu0 0.0
    %299 = vmatprep.subr.mxu0 0.0
    %300 = vmatpush1.msra.mxu0 0.0
    %301 = vmatprep.subr.mxu0 0.0
    %302 = vmatpush1.msra.mxu0 0.0
    %303 = vmatprep.subr.mxu0 0.0
    %304 = vmatpush1.msra.mxu0 0.0
    %305 = vmatprep.subr.mxu0 0.0
    %306 = vmatpush1.msra.mxu0 0.0
    %307 = vmatprep.subr.mxu0 0.0
    %308 = vmatpush1.msra.mxu0 0.0
    %309 = vmatprep.subr.mxu0 0.0
    %310 = vmatpush1.msra.mxu0 0.0
    %311 = vmatprep.subr.mxu0 0.0
    %312 = vmatpush1.msra.mxu0 0.0
    %313 = vmatprep.subr.mxu0 0.0
    %314 = vmatpush1.msra.mxu0 0.0
    %315 = vmatprep.subr.mxu0 0.0
    %316 = vmatpush1.msra.mxu0 0.0
    %317 = vmatprep.subr.mxu0 0.0
    %318 = vmatpush1.msra.mxu0 0.0
    %319 = vmatprep.subr.mxu0 0.0
    %320 = vmatpush1.msra.mxu0 0.0
    %321 = vmatprep.subr.mxu0 0.0
    %322 = vmatpush1.msra.mxu0 0.0
    %323 = vmatprep.subr.mxu0 0.0
    %324 = vmatpush1.msra.mxu0 0.0
    %325 = vmatprep.subr.mxu0 0.0
    %326 = vmatpush1.msra.mxu0 0.0
    %327 = vmatprep.subr.mxu0 0.0
    %328 = vmatpush1.msra.mxu0 0.0
    %329 = vmatprep.subr.mxu0 0.0
    %330 = vmatpush1.msra.mxu0 0.0
    %331 = vmatprep.subr.mxu0 0.0
    %332 = vmatpush1.msra.mxu0 0.0
    %333 = vmatprep.mubr.f32.mxu0 0.0
    %334 = vmatmul.mubr.f32.gmra.mrb[0].mxu0 %v173
    %v335 = vpop.f32.mrb[0].mxu0
    %v336 = vadd.f32 0.0, %v335
    %v337 = vpop.f32.mrb[0].mxu0
    %338 = vmatprep.mubr.f32.mxu0 0.0
    %339 = vmatmul.mubr.f32.gmra.mrb[0].mxu0 %v176
    %v340 = vpop.f32.mrb[0].mxu0
    %v341 = vadd.f32 0.0, %v340
    %v342 = vpop.f32.mrb[0].mxu0
    %343 = vmatprep.mubr.f32.mxu0 0.0
    %344 = vmatmul.mubr.f32.gmra.mrb[0].mxu0 %v179
    %v345 = vpop.f32.mrb[0].mxu0
    %v346 = vadd.f32 0.0, %v345
    %v347 = vpop.f32.mrb[0].mxu0
    %348 = vmatprep.mubr.f32.mxu0 0.0
    %349 = vmatmul.mubr.f32.gmra.mrb[0].mxu0 %v182
    %v350 = vpop.f32.mrb[0].mxu0
    %v351 = vadd.f32 0.0, %v350
    %v352 = vpop.f32.mrb[0].mxu0
    %353 = vdwg.mxu0
    %355 = vrot.lane.b32.xlu0 %v256, 32
    %v356 = vpop.permute.xlu0 %355
    %359 = vrot.lane.b32.xlu0 %v261, 64
    %v360 = vpop.permute.xlu0 %359
    %363 = vrot.lane.b32.xlu0 %v266, 96
    %v364 = vpop.permute.xlu0 %363
    %v366 = vsel %vm64, %v251, %v356
    %vm367 = vcmask 523264
    %v368 = vsel %vm367, %v366, %v360
    %vm369 = vcmask 785408
    %v370 = vsel %vm369, %v368, %v364
    %372 = vrot.lane.b32.xlu0 %v341, 32
    %v373 = vpop.permute.xlu0 %372
    %376 = vrot.lane.b32.xlu0 %v346, 64
    %v377 = vpop.permute.xlu0 %376
    %380 = vrot.lane.b32.xlu0 %v351, 96
    %v381 = vpop.permute.xlu0 %380
    %v383 = vsel %vm64, %v336, %v373
    %v384 = vsel %vm367, %v383, %v377
    %v385 = vsel %vm369, %v384, %v381
    %386 = vst [vmem:[#allocation8] sm:$0xff] %v370
    %387 = vst [vmem:[#allocation9] sm:$0xff] %v385
    %388 = vrot.lane.b32.xlu0 %v57, 96
    %v389 = vpop.permute.xlu0 %388
    %390 = vrot.lane.b32.xlu0 %v58, 96
    %v391 = vpop.permute.xlu0 %390
    %392 = vrot.lane.b32.xlu0 %v59, 96
    %v393 = vpop.permute.xlu0 %392
    %v394 = vsel %vm64, %v389, 0
    %v396 = vsel %vm64, %v391, 0
    %v398 = vsel %vm64, %v393, 0
    %400 = vmatprep.subr.mxu0 0.0
    %401 = vmatpush1.xpose.msra.mxu0 %v396
    %402 = vmatprep.subr.mxu0 0.0
    %403 = vmatpush1.xpose.msra.mxu0 %v398
    %404 = vmatprep.subr.mxu0 0.0
    %405 = vmatpush1.xpose.msra.mxu0 0.0
    %406 = vmatprep.subr.mxu0 0.0
    %407 = vmatpush1.xpose.msra.mxu0 0.0
    %408 = vmatprep.subr.mxu0 0.0
    %409 = vmatpush1.xpose.msra.mxu0 0.0
    %410 = vmatprep.subr.mxu0 0.0
    %411 = vmatpush1.xpose.msra.mxu0 0.0
    %412 = vmatprep.subr.mxu0 0.0
    %413 = vmatpush1.xpose.msra.mxu0 0.0
    %414 = vmatprep.subr.mxu0 0.0
    %415 = vmatpush1.xpose.msra.mxu0 0.0
    %416 = vmatprep.subr.mxu0 0.0
    %417 = vmatpush1.xpose.msra.mxu0 0.0
    %418 = vmatprep.subr.mxu0 0.0
    %419 = vmatpush1.xpose.msra.mxu0 0.0
    %420 = vmatprep.subr.mxu0 0.0
    %421 = vmatpush1.xpose.msra.mxu0 0.0
    %422 = vmatprep.subr.mxu0 0.0
    %423 = vmatpush1.xpose.msra.mxu0 0.0
    %424 = vmatprep.subr.mxu0 0.0
    %425 = vmatpush1.xpose.msra.mxu0 0.0
    %426 = vmatprep.subr.mxu0 0.0
    %427 = vmatpush1.xpose.msra.mxu0 0.0
    %428 = vmatprep.subr.mxu0 0.0
    %429 = vmatpush1.xpose.msra.mxu0 0.0
    %430 = vmatprep.subr.mxu0 0.0
    %431 = vmatpush1.xpose.msra.mxu0 0.0
    %432 = vmatprep.subr.mxu0 0.0
    %433 = vmatpush1.xpose.msra.mxu0 0.0
    %434 = vmatprep.subr.mxu0 0.0
    %435 = vmatpush1.xpose.msra.mxu0 0.0
    %436 = vmatprep.subr.mxu0 0.0
    %437 = vmatpush1.xpose.msra.mxu0 0.0
    %438 = vmatprep.subr.mxu0 0.0
    %439 = vmatpush1.xpose.msra.mxu0 0.0
    %440 = vmatprep.subr.mxu0 0.0
    %441 = vmatpush1.xpose.msra.mxu0 0.0
    %442 = vmatprep.subr.mxu0 0.0
    %443 = vmatpush1.xpose.msra.mxu0 0.0
    %444 = vmatprep.subr.mxu0 0.0
    %445 = vmatpush1.xpose.msra.mxu0 0.0
    %446 = vmatprep.subr.mxu0 0.0
    %447 = vmatpush1.xpose.msra.mxu0 0.0
    %448 = vmatprep.subr.mxu0 0.0
    %449 = vmatpush1.xpose.msra.mxu0 0.0
    %450 = vmatprep.subr.mxu0 0.0
    %451 = vmatpush1.xpose.msra.mxu0 0.0
    %452 = vmatprep.subr.mxu0 0.0
    %453 = vmatpush1.xpose.msra.mxu0 0.0
    %454 = vmatprep.subr.mxu0 0.0
    %455 = vmatpush1.xpose.msra.mxu0 0.0
    %456 = vmatprep.subr.mxu0 0.0
    %457 = vmatpush1.xpose.msra.mxu0 0.0
    %458 = vmatprep.subr.mxu0 0.0
    %459 = vmatpush1.xpose.msra.mxu0 0.0
    %460 = vmatprep.subr.mxu0 0.0
    %461 = vmatpush1.xpose.msra.mxu0 0.0
    %462 = vmatprep.subr.mxu0 0.0
    %463 = vmatpush1.xpose.msra.mxu0 0.0
    %464 = vmatprep.mubr.f32.mxu0 0.0
    %465 = vmatmul.mubr.f32.gmra.mrb[0].mxu0 %v394
    %v466 = vpop.f32.mrb[0].mxu0
    %v467 = vadd.f32 0.0, %v466
    %v468 = vpop.f32.mrb[0].mxu0
    %469 = vdwg.mxu0
    %v470 = vsel %vm144, %v467, -inf
    %471 = vmax.index.xlane.f32.xlu0 %v470
    %v472 = vpop.xlane.xlu0 %471
    %vm473 = vcmp.eq.s32.totalorder %v63, %v472
    %v474 = vsel %vm473, 1, 0
    %v475 = vcvt.s32.f32 %v474
    %v476 = vsel %vm473, -1e+30, %v467
    %v477 = vsel %vm144, %v476, -inf
    %478 = vmax.index.xlane.f32.xlu0 %v477
    %v479 = vpop.xlane.xlu0 %478
    %vm480 = vcmp.eq.s32.totalorder %v63, %v479
    %v481 = vsel %vm480, 1, 0
    %v482 = vcvt.s32.f32 %v481
    %v483 = vsel %vm480, -1e+30, %v476
    %v484 = vsel %vm144, %v483, -inf
    %485 = vmax.index.xlane.f32.xlu0 %v484
    %v486 = vpop.xlane.xlu0 %485
    %vm487 = vcmp.eq.s32.totalorder %v63, %v486
    %v488 = vsel %vm487, 1, 0
    %v489 = vcvt.s32.f32 %v488
    %v490 = vsel %vm487, -1e+30, %v483
    %v491 = vsel %vm144, %v490, -inf
    %492 = vmax.index.xlane.f32.xlu0 %v491
    %v493 = vpop.xlane.xlu0 %492
    %vm494 = vcmp.eq.s32.totalorder %v63, %v493
    %v495 = vsel %vm494, 1, 0
    %v496 = vcvt.s32.f32 %v495
    %v500 = vsel %vm144, %v475, 0
    %v503 = vsel %vm144, %v482, 0
    %v506 = vsel %vm144, %v489, 0
    %v509 = vsel %vm144, %v496, 0
    %511 = vmatprep.subr.mxu0 0.0
    %512 = vmatpush1.msra.mxu0 %v391
    %513 = vmatprep.subr.mxu0 0.0
    %514 = vmatpush1.msra.mxu0 %v393
    %515 = vmatprep.subr.mxu0 0.0
    %516 = vmatpush1.msra.mxu0 0.0
    %517 = vmatprep.subr.mxu0 0.0
    %518 = vmatpush1.msra.mxu0 0.0
    %519 = vmatprep.subr.mxu0 0.0
    %520 = vmatpush1.msra.mxu0 0.0
    %521 = vmatprep.subr.mxu0 0.0
    %522 = vmatpush1.msra.mxu0 0.0
    %523 = vmatprep.subr.mxu0 0.0
    %524 = vmatpush1.msra.mxu0 0.0
    %525 = vmatprep.subr.mxu0 0.0
    %526 = vmatpush1.msra.mxu0 0.0
    %527 = vmatprep.subr.mxu0 0.0
    %528 = vmatpush1.msra.mxu0 0.0
    %529 = vmatprep.subr.mxu0 0.0
    %530 = vmatpush1.msra.mxu0 0.0
    %531 = vmatprep.subr.mxu0 0.0
    %532 = vmatpush1.msra.mxu0 0.0
    %533 = vmatprep.subr.mxu0 0.0
    %534 = vmatpush1.msra.mxu0 0.0
    %535 = vmatprep.subr.mxu0 0.0
    %536 = vmatpush1.msra.mxu0 0.0
    %537 = vmatprep.subr.mxu0 0.0
    %538 = vmatpush1.msra.mxu0 0.0
    %539 = vmatprep.subr.mxu0 0.0
    %540 = vmatpush1.msra.mxu0 0.0
    %541 = vmatprep.subr.mxu0 0.0
    %542 = vmatpush1.msra.mxu0 0.0
    %543 = vmatprep.subr.mxu0 0.0
    %544 = vmatpush1.msra.mxu0 0.0
    %545 = vmatprep.subr.mxu0 0.0
    %546 = vmatpush1.msra.mxu0 0.0
    %547 = vmatprep.subr.mxu0 0.0
    %548 = vmatpush1.msra.mxu0 0.0
    %549 = vmatprep.subr.mxu0 0.0
    %550 = vmatpush1.msra.mxu0 0.0
    %551 = vmatprep.subr.mxu0 0.0
    %552 = vmatpush1.msra.mxu0 0.0
    %553 = vmatprep.subr.mxu0 0.0
    %554 = vmatpush1.msra.mxu0 0.0
    %555 = vmatprep.subr.mxu0 0.0
    %556 = vmatpush1.msra.mxu0 0.0
    %557 = vmatprep.subr.mxu0 0.0
    %558 = vmatpush1.msra.mxu0 0.0
    %559 = vmatprep.subr.mxu0 0.0
    %560 = vmatpush1.msra.mxu0 0.0
    %561 = vmatprep.subr.mxu0 0.0
    %562 = vmatpush1.msra.mxu0 0.0
    %563 = vmatprep.subr.mxu0 0.0
    %564 = vmatpush1.msra.mxu0 0.0
    %565 = vmatprep.subr.mxu0 0.0
    %566 = vmatpush1.msra.mxu0 0.0
    %567 = vmatprep.subr.mxu0 0.0
    %568 = vmatpush1.msra.mxu0 0.0
    %569 = vmatprep.subr.mxu0 0.0
    %570 = vmatpush1.msra.mxu0 0.0
    %571 = vmatprep.subr.mxu0 0.0
    %572 = vmatpush1.msra.mxu0 0.0
    %573 = vmatprep.subr.mxu0 0.0
    %574 = vmatpush1.msra.mxu0 0.0
    %575 = vmatprep.mubr.f32.mxu0 0.0
    %576 = vmatmul.mubr.f32.gmra.mrb[0].mxu0 %v500
    %v577 = vpop.f32.mrb[0].mxu0
    %v578 = vadd.f32 0.0, %v577
    %v579 = vpop.f32.mrb[0].mxu0
    %580 = vmatprep.mubr.f32.mxu0 0.0
    %581 = vmatmul.mubr.f32.gmra.mrb[0].mxu0 %v503
    %v582 = vpop.f32.mrb[0].mxu0
    %v583 = vadd.f32 0.0, %v582
    %v584 = vpop.f32.mrb[0].mxu0
    %585 = vmatprep.mubr.f32.mxu0 0.0
    %586 = vmatmul.mubr.f32.gmra.mrb[0].mxu0 %v506
    %v587 = vpop.f32.mrb[0].mxu0
    %v588 = vadd.f32 0.0, %v587
    %v589 = vpop.f32.mrb[0].mxu0
    %590 = vmatprep.mubr.f32.mxu0 0.0
    %591 = vmatmul.mubr.f32.gmra.mrb[0].mxu0 %v509
    %v592 = vpop.f32.mrb[0].mxu0
    %v593 = vadd.f32 0.0, %v592
    %v594 = vpop.f32.mrb[0].mxu0
    %595 = vdwg.mxu0
    %598 = vrot.lane.b32.xlu0 %v60, 96
    %v599 = vpop.permute.xlu0 %598
    %600 = vrot.lane.b32.xlu0 %v61, 96
    %v601 = vpop.permute.xlu0 %600
    %604 = vmatprep.subr.mxu0 0.0
    %605 = vmatpush1.msra.mxu0 %v599
    %606 = vmatprep.subr.mxu0 0.0
    %607 = vmatpush1.msra.mxu0 %v601
    %608 = vmatprep.subr.mxu0 0.0
    %609 = vmatpush1.msra.mxu0 0.0
    %610 = vmatprep.subr.mxu0 0.0
    %611 = vmatpush1.msra.mxu0 0.0
    %612 = vmatprep.subr.mxu0 0.0
    %613 = vmatpush1.msra.mxu0 0.0
    %614 = vmatprep.subr.mxu0 0.0
    %615 = vmatpush1.msra.mxu0 0.0
    %616 = vmatprep.subr.mxu0 0.0
    %617 = vmatpush1.msra.mxu0 0.0
    %618 = vmatprep.subr.mxu0 0.0
    %619 = vmatpush1.msra.mxu0 0.0
    %620 = vmatprep.subr.mxu0 0.0
    %621 = vmatpush1.msra.mxu0 0.0
    %622 = vmatprep.subr.mxu0 0.0
    %623 = vmatpush1.msra.mxu0 0.0
    %624 = vmatprep.subr.mxu0 0.0
    %625 = vmatpush1.msra.mxu0 0.0
    %626 = vmatprep.subr.mxu0 0.0
    %627 = vmatpush1.msra.mxu0 0.0
    %628 = vmatprep.subr.mxu0 0.0
    %629 = vmatpush1.msra.mxu0 0.0
    %630 = vmatprep.subr.mxu0 0.0
    %631 = vmatpush1.msra.mxu0 0.0
    %632 = vmatprep.subr.mxu0 0.0
    %633 = vmatpush1.msra.mxu0 0.0
    %634 = vmatprep.subr.mxu0 0.0
    %635 = vmatpush1.msra.mxu0 0.0
    %636 = vmatprep.subr.mxu0 0.0
    %637 = vmatpush1.msra.mxu0 0.0
    %638 = vmatprep.subr.mxu0 0.0
    %639 = vmatpush1.msra.mxu0 0.0
    %640 = vmatprep.subr.mxu0 0.0
    %641 = vmatpush1.msra.mxu0 0.0
    %642 = vmatprep.subr.mxu0 0.0
    %643 = vmatpush1.msra.mxu0 0.0
    %644 = vmatprep.subr.mxu0 0.0
    %645 = vmatpush1.msra.mxu0 0.0
    %646 = vmatprep.subr.mxu0 0.0
    %647 = vmatpush1.msra.mxu0 0.0
    %648 = vmatprep.subr.mxu0 0.0
    %649 = vmatpush1.msra.mxu0 0.0
    %650 = vmatprep.subr.mxu0 0.0
    %651 = vmatpush1.msra.mxu0 0.0
    %652 = vmatprep.subr.mxu0 0.0
    %653 = vmatpush1.msra.mxu0 0.0
    %654 = vmatprep.subr.mxu0 0.0
    %655 = vmatpush1.msra.mxu0 0.0
    %656 = vmatprep.subr.mxu0 0.0
    %657 = vmatpush1.msra.mxu0 0.0
    %658 = vmatprep.subr.mxu0 0.0
    %659 = vmatpush1.msra.mxu0 0.0
    %660 = vmatprep.subr.mxu0 0.0
    %661 = vmatpush1.msra.mxu0 0.0
    %662 = vmatprep.subr.mxu0 0.0
    %663 = vmatpush1.msra.mxu0 0.0
    %664 = vmatprep.subr.mxu0 0.0
    %665 = vmatpush1.msra.mxu0 0.0
    %666 = vmatprep.subr.mxu0 0.0
    %667 = vmatpush1.msra.mxu0 0.0
    %668 = vmatprep.mubr.f32.mxu0 0.0
    %669 = vmatmul.mubr.f32.gmra.mrb[0].mxu0 %v500
    %v670 = vpop.f32.mrb[0].mxu0
    %v671 = vadd.f32 0.0, %v670
    %v672 = vpop.f32.mrb[0].mxu0
    %673 = vmatprep.mubr.f32.mxu0 0.0
    %674 = vmatmul.mubr.f32.gmra.mrb[0].mxu0 %v503
    %v675 = vpop.f32.mrb[0].mxu0
    %v676 = vadd.f32 0.0, %v675
    %v677 = vpop.f32.mrb[0].mxu0
    %678 = vmatprep.mubr.f32.mxu0 0.0
    %679 = vmatmul.mubr.f32.gmra.mrb[0].mxu0 %v506
    %v680 = vpop.f32.mrb[0].mxu0
    %v681 = vadd.f32 0.0, %v680
    %v682 = vpop.f32.mrb[0].mxu0
    %683 = vmatprep.mubr.f32.mxu0 0.0
    %684 = vmatmul.mubr.f32.gmra.mrb[0].mxu0 %v509
    %v685 = vpop.f32.mrb[0].mxu0
    %v686 = vadd.f32 0.0, %v685
    %v687 = vpop.f32.mrb[0].mxu0
    %688 = vdwg.mxu0
    %690 = vrot.lane.b32.xlu0 %v583, 32
    %v691 = vpop.permute.xlu0 %690
    %694 = vrot.lane.b32.xlu0 %v588, 64
    %v695 = vpop.permute.xlu0 %694
    %698 = vrot.lane.b32.xlu0 %v593, 96
    %v699 = vpop.permute.xlu0 %698
    %v701 = vsel %vm64, %v578, %v691
    %v702 = vsel %vm367, %v701, %v695
    %v703 = vsel %vm369, %v702, %v699
    %705 = vrot.lane.b32.xlu0 %v676, 32
    %v706 = vpop.permute.xlu0 %705
    %709 = vrot.lane.b32.xlu0 %v681, 64
    %v710 = vpop.permute.xlu0 %709
    %713 = vrot.lane.b32.xlu0 %v686, 96
    %v714 = vpop.permute.xlu0 %713
    %v716 = vsel %vm64, %v671, %v706
    %v717 = vsel %vm367, %v716, %v710
    %v718 = vsel %vm369, %v717, %v714
    %719 = vst [vmem:[#allocation8 + $0x8] sm:$0xff] %v703
    %720 = vst [vmem:[#allocation9 + $0x8] sm:$0xff] %v718
    // Predicated region
    $region26: #{tpu_custom_call.1} parent=1 // pred_check
      _
    $region27: #{tpu_custom_call.1} parent=1 // pred_check_branch
      %722 = sbr.rel (0) target = $region29
    $region28: #{tpu_custom_call.1} parent=1 // pred_region
      %s724 = ssub.s32 256, 256
      %725 = vsyncadd [#allocation4], %s724
      %s727 = sshll.u32 [#allocation8], 4
      %s728 = int_to_ptr.vmem [resolvable:$true] %s727
      %730 = dma.vmem_to_hbm [thread:$0]  %s728, 256, %s3, [#allocation4]
    $region29: #{tpu_custom_call.1} parent=1 // pred_fallthru
      _
    // Predicated region
    $region30: #{tpu_custom_call.1} parent=1 // pred_check
      _
    $region31: #{tpu_custom_call.1} parent=1 // pred_check_branch
      %732 = sbr.rel (0) target = $region33
    $region32: #{tpu_custom_call.1} parent=1 // pred_region
      %s734 = ssub.s32 256, 256
      %735 = vsyncadd [#allocation10], %s734
      %s737 = sshll.u32 [#allocation9], 4
      %s738 = int_to_ptr.vmem [resolvable:$true] %s737
      %740 = dma.vmem_to_hbm [thread:$0]  %s738, 256, %s4, [#allocation10]
    $region33: #{tpu_custom_call.1} parent=1 // pred_fallthru
      _
    // Predicated region
    $region34: #{tpu_custom_call.1} parent=1 // pred_check
      _
    $region35: #{tpu_custom_call.1} parent=1 // pred_check_branch
      %742 = sbr.rel (0) target = $region37
    $region36: #{tpu_custom_call.1} parent=1 // pred_region
      %743 = dma.done [#allocation4], 256
    $region37: #{tpu_custom_call.1} parent=1 // pred_fallthru
      _
    // Predicated region
    $region38: #{tpu_custom_call.1} parent=1 // pred_check
      _
    $region39: #{tpu_custom_call.1} parent=1 // pred_check_branch
      %745 = sbr.rel (0) target = $region41
    $region40: #{tpu_custom_call.1} parent=1 // pred_region
      %746 = dma.done [#allocation10], 256
    $region41: #{tpu_custom_call.1} parent=1 // pred_fallthru
      _
    %747 = vsyncpa [#allocation3], 1
    %748 = vsyncpa [#allocation6], 1
    %749 = vsyncpa [#allocation4], 1
    %750 = vsyncpa [#allocation10], 1

</llo_original>
